<compile_context>
chip_gen: v7x
topology: tpu7x:2x2x1
jax: 0.10.0
libtpu: 0.0.40
codegen_flags: <defaults>
</compile_context>

<pallas_src>
import functools
import math

import jax
import jax.numpy as jnp
from jax.experimental import pallas as pl
from jax.experimental.pallas import tpu as pltpu


_DB_CONST = math.log(10.0) / 20.0  # g = 10**(-softplus/20) == exp(-softplus*ln(10)/20)


def _fvn_decoder_kernel(B, S, Mg, Pg, g_db,
                        x_ref, w1t_ref, b1_ref, w2_ref, b2_ref,
                        g_ref, fir_ref):
    """Fused FVN decoder.

    x_ref   : (B*S, H)     latent with batch flattened into rows
    w1t_ref : (H, Pg+1)    stage-1 weights of g & fir fused on columns, pre-transposed
    b1_ref  : (1, Pg+1)    fused stage-1 bias
    w2_ref  : (Mg+Mf, S)   stage-2 weights of g & fir fused on rows
    b2_ref  : (Mg+Mf, 1)   fused stage-2 bias
    g_ref   : (B, Mg, Pg)
    fir_ref : (B, Mf, 1)
    """
    # ---- Stage 1: one MXU matmul for the whole batch and BOTH decoders -------
    y1 = jnp.dot(x_ref[...], w1t_ref[...], preferred_element_type=jnp.float32)
    y1 = y1 + b1_ref[...]                               # (B*S, Pg+1)

    w2 = w2_ref[...]                                    # (Mg+Mf, S)
    b2 = b2_ref[...]                                    # (Mg+Mf, 1)

    # ---- Stage 2: one fused MXU matmul per batch element (static unroll) -----
    for b in range(B):                                  # B is a small Python int
        y1b = y1[b * S:(b + 1) * S, :]                                    # (S, Pg+1)
        y2 = jnp.dot(w2, y1b, preferred_element_type=jnp.float32) + b2    # (Mg+Mf, Pg+1)

        g = y2[:Mg, :Pg]
        if g_db:
            # g = 10 ** (-softplus(g) / 20)
            g = jnp.exp(-jax.nn.softplus(g) * _DB_CONST)
        g_ref[b] = g.astype(g_ref.dtype)

        fir_ref[b] = y2[Mg:, Pg:Pg + 1].astype(fir_ref.dtype)


def fvn_decoder(latent, params, *, g_db=False):
    """Pallas implementation of FVN_Decoder.forward."""
    B, S, H = latent.shape
    w1g, b1g, w2g, b2g = params["g"]
    w1f, b1f, w2f, b2f = params["fir"]
    Pg = w1g.shape[0]
    Mg = w2g.shape[0]
    Mf = w2f.shape[0]

    # Wrapper-side layout plumbing (cheap XLA ops):
    #  * fuse + pre-transpose stage-1 weights  -> kernel never transposes
    #  * fuse stage-2 weights/biases           -> 1 matmul per batch element
    #  * flatten the batch for stage 1         -> no per-batch grid
    w1t = jnp.concatenate([w1g, w1f], axis=0).T          # (H, Pg+1)
    b1 = jnp.concatenate([b1g, b1f], axis=-1)            # (1, Pg+1)
    w2 = jnp.concatenate([w2g, w2f], axis=0)             # (Mg+Mf, S)
    b2 = jnp.concatenate([b2g, b2f], axis=0)             # (Mg+Mf, 1)
    x2d = latent.reshape(B * S, H)

    kernel = functools.partial(_fvn_decoder_kernel, B, S, Mg, Pg, g_db)

    def full_spec(shape):
        n = len(shape)
        return pl.BlockSpec(shape, lambda i, _n=n: (0,) * _n)

    g_out, fir_out = pl.pallas_call(
        kernel,
        out_shape=(
            jax.ShapeDtypeStruct((B, Mg, Pg), jnp.float32),
            jax.ShapeDtypeStruct((B, Mf, 1), jnp.float32),
        ),
        grid=(1,),  # single step: whole problem fits VMEM many times over
        in_specs=[full_spec(x2d.shape), full_spec(w1t.shape), full_spec(b1.shape),
                  full_spec(w2.shape), full_spec(b2.shape)],
        out_specs=(full_spec((B, Mg, Pg)), full_spec((B, Mf, 1))),
        compiler_params=pltpu.CompilerParams(
            dimension_semantics=("arbitrary",)),
    )(x2d, w1t, b1, w2, b2)

    # PyTorch: g = g_decoder(latent).squeeze(-1)   -> no-op since gain_per_seg > 1
    #          fir = fir_decoder(latent).squeeze(-1) -> drops the size-1 last dim
    return dict(g=g_out, fir=fir_out[..., 0])


# ------------------------- pure-JAX reference (for checking) -----------------
def _linearlinear_ref(x, w1, b1, w2, b2):
    y = x @ w1.T + b1[0]                 # (B, S, P)
    y = jnp.swapaxes(y, -1, -2)          # (B, P, S)
    y = y @ w2.T + b2[:, 0]              # (B, P, M)
    return jnp.swapaxes(y, -1, -2)       # (B, M, P)


def fvn_decoder_ref(latent, params, *, g_db=False):
    w1g, b1g, w2g, b2g = params["g"]
    w1f, b1f, w2f, b2f = params["fir"]
    g = _linearlinear_ref(latent, w1g, b1g, w2g, b2g)            # (B, Mg, Pg)
    if g_db:
        g = 10.0 ** (-jax.nn.softplus(g) / 20.0)
    fir = _linearlinear_ref(latent, w1f, b1f, w2f, b2f)[..., 0]  # (B, Mf)
    return dict(g=g, fir=fir)


# ------------------------------- parameter init -------------------------------
def init_params(key, input_shape, num_seg, gain_per_seg, fir_len):
    S, H = input_shape
    ks = jax.random.split(key, 8)
    scale = 0.05

    def w(k, shape):
        return scale * jax.random.normal(k, shape, dtype=jnp.float32)

    # g decoder: Linear(H -> gain_per_seg), then Linear(S -> num_seg)
    w1g = w(ks[0], (gain_per_seg, H))
    b1g = w(ks[1], (1, gain_per_seg))
    w2g = w(ks[2], (num_seg, S))
    b2g = w(ks[3], (num_seg, 1))
    # fir decoder: Linear(H -> 1), then Linear(S -> fir_len)
    w1f = w(ks[4], (1, H))
    b1f = w(ks[5], (1, 1))
    w2f = w(ks[6], (fir_len, S))
    b2f = w(ks[7], (fir_len, 1))
    return dict(g=(w1g, b1g, w2g, b2g), fir=(w1f, b1f, w2f, b2f))


if __name__ == "__main__":
    # Small shapes consistent with the module's forward:
    # latent: (B, S, H); g: (B, num_seg, gain_per_seg); fir: (B, fir_len)
    B, S, H = 2, 16, 32
    num_seg, gain_per_seg, fir_len = 12, 4, 10

    key = jax.random.PRNGKey(0)
    k_lat, k_par = jax.random.split(key)
    latent = jax.random.normal(k_lat, (B, S, H), dtype=jnp.float32)
    params = init_params(k_par, (S, H), num_seg, gain_per_seg, fir_len)

    ok = True
    for g_db in (False, True):
        out = fvn_decoder(latent, params, g_db=g_db)
        jax.block_until_ready(out)
        ref = fvn_decoder_ref(latent, params, g_db=g_db)
        assert out["g"].shape == (B, num_seg, gain_per_seg)
        assert out["fir"].shape == (B, fir_len)
        ok &= bool(jnp.allclose(out["g"], ref["g"], atol=1e-5, rtol=1e-5))
        ok &= bool(jnp.allclose(out["fir"], ref["fir"], atol=1e-5, rtol=1e-5))

    if ok:
        print("KERNEL_OK")
    else:
        print("MISMATCH")
</pallas_src>

<mosaic_0001>
module attributes {stable_mosaic.version = 11 : i64} {
  func.func @_fvn_decoder_kernel(%arg0: i32, %arg1: memref<32x32xf32, #tpu.memory_space<vmem>>, %arg2: memref<32x5xf32, #tpu.memory_space<vmem>>, %arg3: memref<1x5xf32, #tpu.memory_space<vmem>>, %arg4: memref<22x16xf32, #tpu.memory_space<vmem>>, %arg5: memref<22x1xf32, #tpu.memory_space<vmem>>, %arg6: memref<2x12x4xf32, #tpu.memory_space<vmem>>, %arg7: memref<2x10x1xf32, #tpu.memory_space<vmem>>) attributes {dimension_semantics = [#tpu.dimension_semantics<arbitrary>], iteration_bounds = array<i64: 1>, scalar_prefetch = 0 : i64, scratch_operands = 0 : i64, tpu.core_type = #tpu.core_type<tc>, window_params = [{pipeline_mode = #tpu.pipeline_mode<synchronous>, transform_indices = @transform_0, window_bounds = array<i64: 32, 32>}, {pipeline_mode = #tpu.pipeline_mode<synchronous>, transform_indices = @transform_1, window_bounds = array<i64: 32, 5>}, {pipeline_mode = #tpu.pipeline_mode<synchronous>, transform_indices = @transform_2, window_bounds = array<i64: 1, 5>}, {pipeline_mode = #tpu.pipeline_mode<synchronous>, transform_indices = @transform_3, window_bounds = array<i64: 22, 16>}, {pipeline_mode = #tpu.pipeline_mode<synchronous>, transform_indices = @transform_4, window_bounds = array<i64: 22, 1>}, {pipeline_mode = #tpu.pipeline_mode<synchronous>, transform_indices = @transform_5, window_bounds = array<i64: 2, 12, 4>}, {pipeline_mode = #tpu.pipeline_mode<synchronous>, transform_indices = @transform_6, window_bounds = array<i64: 2, 10, 1>}]} {
    %c0 = arith.constant 0 : index
    %c0_0 = arith.constant 0 : index
    %0 = vector.load %arg1[%c0, %c0_0] : memref<32x32xf32, #tpu.memory_space<vmem>>, vector<32x32xf32>
    %c0_1 = arith.constant 0 : index
    %c0_2 = arith.constant 0 : index
    %1 = vector.load %arg2[%c0_1, %c0_2] : memref<32x5xf32, #tpu.memory_space<vmem>>, vector<32x5xf32>
    %cst = arith.constant dense<0.000000e+00> : vector<32x5xf32>
    %2 = tpu.matmul %0, %1, %cst {dimension_numbers = #tpu.dot_dimension_numbers<[1], [0], [0], [1], [0, 0, 1, 1], [], []>} : vector<32x32xf32>, vector<32x5xf32>, vector<32x5xf32> -> vector<32x5xf32>
    %c0_3 = arith.constant 0 : index
    %c0_4 = arith.constant 0 : index
    %3 = vector.load %arg3[%c0_3, %c0_4] : memref<1x5xf32, #tpu.memory_space<vmem>>, vector<1x5xf32>
    %4 = vector.broadcast %3 : vector<1x5xf32> to vector<32x5xf32>
    %5 = arith.addf %2, %4 : vector<32x5xf32>
    %c0_5 = arith.constant 0 : index
    %c0_6 = arith.constant 0 : index
    %6 = vector.load %arg4[%c0_5, %c0_6] : memref<22x16xf32, #tpu.memory_space<vmem>>, vector<22x16xf32>
    %c0_7 = arith.constant 0 : index
    %c0_8 = arith.constant 0 : index
    %7 = vector.load %arg5[%c0_7, %c0_8] : memref<22x1xf32, #tpu.memory_space<vmem>>, vector<22x1xf32>
    %8 = vector.extract_strided_slice %5 {offsets = [0, 0], sizes = [16, 5], strides = [1, 1]} : vector<32x5xf32> to vector<16x5xf32>
    %cst_9 = arith.constant dense<0.000000e+00> : vector<22x5xf32>
    %9 = tpu.matmul %6, %8, %cst_9 {dimension_numbers = #tpu.dot_dimension_numbers<[1], [0], [0], [1], [0, 0, 1, 1], [], []>} : vector<22x16xf32>, vector<16x5xf32>, vector<22x5xf32> -> vector<22x5xf32>
    %10 = vector.broadcast %7 : vector<22x1xf32> to vector<22x5xf32>
    %11 = arith.addf %9, %10 : vector<22x5xf32>
    %12 = vector.extract_strided_slice %11 {offsets = [0, 0], sizes = [12, 4], strides = [1, 1]} : vector<22x5xf32> to vector<12x4xf32>
    %c0_10 = arith.constant 0 : index
    %c0_11 = arith.constant 0 : index
    %c0_12 = arith.constant 0 : index
    %13 = vector.load %arg6[%c0_10, %c0_11, %c0_12] : memref<2x12x4xf32, #tpu.memory_space<vmem>>, vector<1x12x4xf32>
    %14 = vector.shape_cast %13 : vector<1x12x4xf32> to vector<12x4xf32>
    %15 = vector.shape_cast %12 : vector<12x4xf32> to vector<1x12x4xf32>
    tpu.vector_store %arg6[%c0_10, %c0_11, %c0_12], %15 {strides = array<i32>} : memref<2x12x4xf32, #tpu.memory_space<vmem>>, vector<1x12x4xf32>,
    %16 = vector.extract_strided_slice %11 {offsets = [12, 4], sizes = [10, 1], strides = [1, 1]} : vector<22x5xf32> to vector<10x1xf32>
    %c0_13 = arith.constant 0 : index
    %c0_14 = arith.constant 0 : index
    %c0_15 = arith.constant 0 : index
    %17 = vector.load %arg7[%c0_13, %c0_14, %c0_15] : memref<2x10x1xf32, #tpu.memory_space<vmem>>, vector<1x10x1xf32>
    %18 = vector.shape_cast %17 : vector<1x10x1xf32> to vector<10x1xf32>
    %19 = vector.shape_cast %16 : vector<10x1xf32> to vector<1x10x1xf32>
    tpu.vector_store %arg7[%c0_13, %c0_14, %c0_15], %19 {strides = array<i32>} : memref<2x10x1xf32, #tpu.memory_space<vmem>>, vector<1x10x1xf32>,
    %20 = vector.extract_strided_slice %5 {offsets = [16, 0], sizes = [16, 5], strides = [1, 1]} : vector<32x5xf32> to vector<16x5xf32>
    %cst_16 = arith.constant dense<0.000000e+00> : vector<22x5xf32>
    %21 = tpu.matmul %6, %20, %cst_16 {dimension_numbers = #tpu.dot_dimension_numbers<[1], [0], [0], [1], [0, 0, 1, 1], [], []>} : vector<22x16xf32>, vector<16x5xf32>, vector<22x5xf32> -> vector<22x5xf32>
    %22 = vector.broadcast %7 : vector<22x1xf32> to vector<22x5xf32>
    %23 = arith.addf %21, %22 : vector<22x5xf32>
    %24 = vector.extract_strided_slice %23 {offsets = [0, 0], sizes = [12, 4], strides = [1, 1]} : vector<22x5xf32> to vector<12x4xf32>
    %c1 = arith.constant 1 : index
    %c0_17 = arith.constant 0 : index
    %c0_18 = arith.constant 0 : index
    %25 = vector.load %arg6[%c1, %c0_17, %c0_18] : memref<2x12x4xf32, #tpu.memory_space<vmem>>, vector<1x12x4xf32>
    %26 = vector.shape_cast %25 : vector<1x12x4xf32> to vector<12x4xf32>
    %27 = vector.shape_cast %24 : vector<12x4xf32> to vector<1x12x4xf32>
    tpu.vector_store %arg6[%c1, %c0_17, %c0_18], %27 {strides = array<i32>} : memref<2x12x4xf32, #tpu.memory_space<vmem>>, vector<1x12x4xf32>,
    %28 = vector.extract_strided_slice %23 {offsets = [12, 4], sizes = [10, 1], strides = [1, 1]} : vector<22x5xf32> to vector<10x1xf32>
    %c1_19 = arith.constant 1 : index
    %c0_20 = arith.constant 0 : index
    %c0_21 = arith.constant 0 : index
    %29 = vector.load %arg7[%c1_19, %c0_20, %c0_21] : memref<2x10x1xf32, #tpu.memory_space<vmem>>, vector<1x10x1xf32>
    %30 = vector.shape_cast %29 : vector<1x10x1xf32> to vector<10x1xf32>
    %31 = vector.shape_cast %28 : vector<10x1xf32> to vector<1x10x1xf32>
    tpu.vector_store %arg7[%c1_19, %c0_20, %c0_21], %31 {strides = array<i32>} : memref<2x10x1xf32, #tpu.memory_space<vmem>>, vector<1x10x1xf32>,
    return
  }
  func.func @transform_0(%arg0: i32) -> (i32, i32) {
    %c0_i32 = arith.constant 0 : i32
    %c0_i32_0 = arith.constant 0 : i32
    %c0_i32_1 = arith.constant 0 : i32
    return %c0_i32, %c0_i32_0 : i32, i32
  }
  func.func @transform_1(%arg0: i32) -> (i32, i32) {
    %c0_i32 = arith.constant 0 : i32
    %c0_i32_0 = arith.constant 0 : i32
    %c0_i32_1 = arith.constant 0 : i32
    return %c0_i32, %c0_i32_0 : i32, i32
  }
  func.func @transform_2(%arg0: i32) -> (i32, i32) {
    %c0_i32 = arith.constant 0 : i32
    %c0_i32_0 = arith.constant 0 : i32
    %c0_i32_1 = arith.constant 0 : i32
    return %c0_i32, %c0_i32_0 : i32, i32
  }
  func.func @transform_3(%arg0: i32) -> (i32, i32) {
    %c0_i32 = arith.constant 0 : i32
    %c0_i32_0 = arith.constant 0 : i32
    %c0_i32_1 = arith.constant 0 : i32
    return %c0_i32, %c0_i32_0 : i32, i32
  }
  func.func @transform_4(%arg0: i32) -> (i32, i32) {
    %c0_i32 = arith.constant 0 : i32
    %c0_i32_0 = arith.constant 0 : i32
    %c0_i32_1 = arith.constant 0 : i32
    return %c0_i32, %c0_i32_0 : i32, i32
  }
  func.func @transform_5(%arg0: i32) -> (i32, i32, i32) {
    %c0_i32 = arith.constant 0 : i32
    %c0_i32_0 = arith.constant 0 : i32
    %c0_i32_1 = arith.constant 0 : i32
    %c0_i32_2 = arith.constant 0 : i32
    return %c0_i32, %c0_i32_0, %c0_i32_1 : i32, i32, i32
  }
  func.func @transform_6(%arg0: i32) -> (i32, i32, i32) {
    %c0_i32 = arith.constant 0 : i32
    %c0_i32_0 = arith.constant 0 : i32
    %c0_i32_1 = arith.constant 0 : i32
    %c0_i32_2 = arith.constant 0 : i32
    return %c0_i32, %c0_i32_0, %c0_i32_1 : i32, i32, i32
  }
}

</mosaic_0001>

<llo_original>
// kernel: tpu_custom_call.1
$region0: #{tpu_custom_call.1}
  #allocation0 [shape = 'u32[]', space=smem, size = 0x4, offset = 0x4, fixed_abs, tag = 'smem constant byte address 0x4 - core index']
  #allocation1 [shape = 'u32[144,128]{1,0:T(1,128)}', space=vmem, size = 0x12000, scoped, tag = 'internal scratch']
  %s0 = inlined_call_operand.vmem [shape: f32[32,32], index: 0, kind: input, shape index: {}]
  %s1 = inlined_call_operand.vmem [shape: f32[32,5], index: 1, kind: input, shape index: {}]
  %s2 = inlined_call_operand.vmem [shape: f32[1,5], index: 2, kind: input, shape index: {}]
  %s3 = inlined_call_operand.vmem [shape: f32[22,16], index: 3, kind: input, shape index: {}]
  %s4 = inlined_call_operand.vmem [shape: f32[22,1], index: 4, kind: input, shape index: {}]
  %s5 = inlined_call_operand.vmem [shape: f32[2,12,4], index: 5, kind: output, shape index: {0}]
  %s6 = inlined_call_operand.vmem [shape: f32[2,10,1], index: 6, kind: output, shape index: {1}]
  %7 = xla_tuple %s5, %s6
  %s8 = sld [smem:[#allocation0]]
  $region38: #{tpu_custom_call.1} parent=0
    _
  %s10 = ssub.s32 1, %s8
  %s11 = scalar_select 0, %s10, %s8
  // Predicated region
  $region2: #{tpu_custom_call.1} parent=0 // pred_check
    _
  $region3: #{tpu_custom_call.1} parent=0 // pred_check_branch
    %13 = sbr.rel (0) target = $region5
  $region4: #{tpu_custom_call.1} parent=0 // pred_region
    _
  $region5: #{tpu_custom_call.1} parent=0 // pred_fallthru
    _
  // Predicated region
  $region6: #{tpu_custom_call.1} parent=0 // pred_check
    _
  $region7: #{tpu_custom_call.1} parent=0 // pred_check_branch
    %15 = sbr.rel (0) target = $region9
  $region8: #{tpu_custom_call.1} parent=0 // pred_region
    _
  $region9: #{tpu_custom_call.1} parent=0 // pred_fallthru
    _
  // Predicated region
  $region10: #{tpu_custom_call.1} parent=0 // pred_check
    _
  $region11: #{tpu_custom_call.1} parent=0 // pred_check_branch
    %17 = sbr.rel (0) target = $region13
  $region12: #{tpu_custom_call.1} parent=0 // pred_region
    _
  $region13: #{tpu_custom_call.1} parent=0 // pred_fallthru
    _
  // Predicated region
  $region14: #{tpu_custom_call.1} parent=0 // pred_check
    _
  $region15: #{tpu_custom_call.1} parent=0 // pred_check_branch
    %19 = sbr.rel (0) target = $region17
  $region16: #{tpu_custom_call.1} parent=0 // pred_region
    _
  $region17: #{tpu_custom_call.1} parent=0 // pred_fallthru
    _
  // Predicated region
  $region18: #{tpu_custom_call.1} parent=0 // pred_check
    _
  $region19: #{tpu_custom_call.1} parent=0 // pred_check_branch
    %21 = sbr.rel (0) target = $region21
  $region20: #{tpu_custom_call.1} parent=0 // pred_region
    _
  $region21: #{tpu_custom_call.1} parent=0 // pred_fallthru
    _
  %v22 = vld [vmem:[%s0] sm:$0xff]
  %v23 = vld [vmem:[%s0 + $0x8] sm:$0xff]
  %v24 = vld [vmem:[%s0 + $0x10] sm:$0xff]
  %v25 = vld [vmem:[%s0 + $0x18] sm:$0xff]
  %v26 = vld [vmem:[%s1] sm:$0xff]
  %v27 = vld [vmem:[%s1 + $0x8] sm:$0xff]
  %v28 = vld [vmem:[%s1 + $0x10] sm:$0xff]
  %v29 = vld [vmem:[%s1 + $0x18] sm:$0xff]
  %v30 = vld [vmem:[%s2] sm:$0x1]
  %v32 = vlaneseq
  %v33 = vshrl.u32 %v32, 7
  %v34 = vsub.s32 0, %v33
  %v35 = vrot.slane %v30, %v34
  %vm37 = vcmask 261120
  %v39 = vsel %vm37, %v22, 0
  %v42 = vsel %vm37, %v23, 0
  %v45 = vsel %vm37, %v24, 0
  %v48 = vsel %vm37, %v25, 0
  %50 = vmatprep.subr.mxu0 0.0
  %51 = vmatpush1.msra.mxu0 %v26
  %52 = vmatprep.subr.mxu0 0.0
  %53 = vmatpush1.msra.mxu0 %v27
  %54 = vmatprep.subr.mxu0 0.0
  %55 = vmatpush1.msra.mxu0 %v28
  %56 = vmatprep.subr.mxu0 0.0
  %57 = vmatpush1.msra.mxu0 %v29
  %58 = vmatprep.subr.mxu0 0.0
  %59 = vmatpush1.msra.mxu0 0.0
  %60 = vmatprep.subr.mxu0 0.0
  %61 = vmatpush1.msra.mxu0 0.0
  %62 = vmatprep.subr.mxu0 0.0
  %63 = vmatpush1.msra.mxu0 0.0
  %64 = vmatprep.subr.mxu0 0.0
  %65 = vmatpush1.msra.mxu0 0.0
  %66 = vmatprep.subr.mxu0 0.0
  %67 = vmatpush1.msra.mxu0 0.0
  %68 = vmatprep.subr.mxu0 0.0
  %69 = vmatpush1.msra.mxu0 0.0
  %70 = vmatprep.subr.mxu0 0.0
  %71 = vmatpush1.msra.mxu0 0.0
  %72 = vmatprep.subr.mxu0 0.0
  %73 = vmatpush1.msra.mxu0 0.0
  %74 = vmatprep.subr.mxu0 0.0
  %75 = vmatpush1.msra.mxu0 0.0
  %76 = vmatprep.subr.mxu0 0.0
  %77 = vmatpush1.msra.mxu0 0.0
  %78 = vmatprep.subr.mxu0 0.0
  %79 = vmatpush1.msra.mxu0 0.0
  %80 = vmatprep.subr.mxu0 0.0
  %81 = vmatpush1.msra.mxu0 0.0
  %82 = vmatprep.subr.mxu0 0.0
  %83 = vmatpush1.msra.mxu0 0.0
  %84 = vmatprep.subr.mxu0 0.0
  %85 = vmatpush1.msra.mxu0 0.0
  %86 = vmatprep.subr.mxu0 0.0
  %87 = vmatpush1.msra.mxu0 0.0
  %88 = vmatprep.subr.mxu0 0.0
  %89 = vmatpush1.msra.mxu0 0.0
  %90 = vmatprep.subr.mxu0 0.0
  %91 = vmatpush1.msra.mxu0 0.0
  %92 = vmatprep.subr.mxu0 0.0
  %93 = vmatpush1.msra.mxu0 0.0
  %94 = vmatprep.subr.mxu0 0.0
  %95 = vmatpush1.msra.mxu0 0.0
  %96 = vmatprep.subr.mxu0 0.0
  %97 = vmatpush1.msra.mxu0 0.0
  %98 = vmatprep.subr.mxu0 0.0
  %99 = vmatpush1.msra.mxu0 0.0
  %100 = vmatprep.subr.mxu0 0.0
  %101 = vmatpush1.msra.mxu0 0.0
  %102 = vmatprep.subr.mxu0 0.0
  %103 = vmatpush1.msra.mxu0 0.0
  %104 = vmatprep.subr.mxu0 0.0
  %105 = vmatpush1.msra.mxu0 0.0
  %106 = vmatprep.subr.mxu0 0.0
  %107 = vmatpush1.msra.mxu0 0.0
  %108 = vmatprep.subr.mxu0 0.0
  %109 = vmatpush1.msra.mxu0 0.0
  %110 = vmatprep.subr.mxu0 0.0
  %111 = vmatpush1.msra.mxu0 0.0
  %112 = vmatprep.subr.mxu0 0.0
  %113 = vmatpush1.msra.mxu0 0.0
  %114 = vmatprep.mubr.f32.mxu0 0.0
  %115 = vmatmul.mubr.f32.gmra.mrb[0].mxu0 %v39
  %v116 = vpop.f32.mrb[0].mxu0
  %v117 = vadd.f32 %v35, %v116
  %v118 = vpop.f32.mrb[0].mxu0
  %119 = vmatprep.mubr.f32.mxu0 0.0
  %120 = vmatmul.mubr.f32.gmra.mrb[0].mxu0 %v42
  %v121 = vpop.f32.mrb[0].mxu0
  %v122 = vadd.f32 %v35, %v121
  %v123 = vpop.f32.mrb[0].mxu0
  %124 = vmatprep.mubr.f32.mxu0 0.0
  %125 = vmatmul.mubr.f32.gmra.mrb[0].mxu0 %v45
  %v126 = vpop.f32.mrb[0].mxu0
  %v127 = vadd.f32 %v35, %v126
  %v128 = vpop.f32.mrb[0].mxu0
  %129 = vmatprep.mubr.f32.mxu0 0.0
  %130 = vmatmul.mubr.f32.gmra.mrb[0].mxu0 %v48
  %v131 = vpop.f32.mrb[0].mxu0
  %v132 = vadd.f32 %v35, %v131
  %v133 = vpop.f32.mrb[0].mxu0
  %134 = vdwg.mxu0
  %v135 = vld [vmem:[%s3] sm:$0xff]
  %v136 = vld [vmem:[%s3 + $0x8] sm:$0xff]
  %v137 = vld [vmem:[%s3 + $0x10] sm:$0x3f]
  %v138 = vld [vmem:[%s4] sm:$0xff]
  %v139 = vld [vmem:[%s4 + $0x8] sm:$0xff]
  %v140 = vld [vmem:[%s4 + $0x10] sm:$0x3f]
  %142 = vset.pattern.permute.xlu0 0
  %143 = vperm.xlu0 %142, %v138
  %v144 = vpop.permute.xlu0 %143
  %147 = vset.pattern.permute.xlu0 0
  %148 = vperm.xlu0 %147, %v139
  %v149 = vpop.permute.xlu0 %148
  %152 = vset.pattern.permute.xlu0 0
  %153 = vperm.xlu0 %152, %v140
  %v154 = vpop.permute.xlu0 %153
  %vm156 = vcmask 130048
  %v158 = vsel %vm156, %v135, 0
  %v161 = vsel %vm156, %v136, 0
  %v164 = vsel %vm156, %v137, 0
  %166 = vmatprep.subr.mxu0 0.0
  %167 = vmatpush1.msra.mxu0 %v117
  %168 = vmatprep.subr.mxu0 0.0
  %169 = vmatpush1.msra.mxu0 %v122
  %170 = vmatprep.subr.mxu0 0.0
  %171 = vmatpush1.msra.mxu0 0.0
  %172 = vmatprep.subr.mxu0 0.0
  %173 = vmatpush1.msra.mxu0 0.0
  %174 = vmatprep.subr.mxu0 0.0
  %175 = vmatpush1.msra.mxu0 0.0
  %176 = vmatprep.subr.mxu0 0.0
  %177 = vmatpush1.msra.mxu0 0.0
  %178 = vmatprep.subr.mxu0 0.0
  %179 = vmatpush1.msra.mxu0 0.0
  %180 = vmatprep.subr.mxu0 0.0
  %181 = vmatpush1.msra.mxu0 0.0
  %182 = vmatprep.subr.mxu0 0.0
  %183 = vmatpush1.msra.mxu0 0.0
  %184 = vmatprep.subr.mxu0 0.0
  %185 = vmatpush1.msra.mxu0 0.0
  %186 = vmatprep.subr.mxu0 0.0
  %187 = vmatpush1.msra.mxu0 0.0
  %188 = vmatprep.subr.mxu0 0.0
  %189 = vmatpush1.msra.mxu0 0.0
  %190 = vmatprep.subr.mxu0 0.0
  %191 = vmatpush1.msra.mxu0 0.0
  %192 = vmatprep.subr.mxu0 0.0
  %193 = vmatpush1.msra.mxu0 0.0
  %194 = vmatprep.subr.mxu0 0.0
  %195 = vmatpush1.msra.mxu0 0.0
  %196 = vmatprep.subr.mxu0 0.0
  %197 = vmatpush1.msra.mxu0 0.0
  %198 = vmatprep.subr.mxu0 0.0
  %199 = vmatpush1.msra.mxu0 0.0
  %200 = vmatprep.subr.mxu0 0.0
  %201 = vmatpush1.msra.mxu0 0.0
  %202 = vmatprep.subr.mxu0 0.0
  %203 = vmatpush1.msra.mxu0 0.0
  %204 = vmatprep.subr.mxu0 0.0
  %205 = vmatpush1.msra.mxu0 0.0
  %206 = vmatprep.subr.mxu0 0.0
  %207 = vmatpush1.msra.mxu0 0.0
  %208 = vmatprep.subr.mxu0 0.0
  %209 = vmatpush1.msra.mxu0 0.0
  %210 = vmatprep.subr.mxu0 0.0
  %211 = vmatpush1.msra.mxu0 0.0
  %212 = vmatprep.subr.mxu0 0.0
  %213 = vmatpush1.msra.mxu0 0.0
  %214 = vmatprep.subr.mxu0 0.0
  %215 = vmatpush1.msra.mxu0 0.0
  %216 = vmatprep.subr.mxu0 0.0
  %217 = vmatpush1.msra.mxu0 0.0
  %218 = vmatprep.subr.mxu0 0.0
  %219 = vmatpush1.msra.mxu0 0.0
  %220 = vmatprep.subr.mxu0 0.0
  %221 = vmatpush1.msra.mxu0 0.0
  %222 = vmatprep.subr.mxu0 0.0
  %223 = vmatpush1.msra.mxu0 0.0
  %224 = vmatprep.subr.mxu0 0.0
  %225 = vmatpush1.msra.mxu0 0.0
  %226 = vmatprep.subr.mxu0 0.0
  %227 = vmatpush1.msra.mxu0 0.0
  %228 = vmatprep.subr.mxu0 0.0
  %229 = vmatpush1.msra.mxu0 0.0
  %230 = vmatprep.mubr.f32.mxu0 0.0
  %231 = vmatmul.mubr.f32.gmra.mrb[0].mxu0 %v158
  %v232 = vpop.f32.mrb[0].mxu0
  %v233 = vadd.f32 %v144, %v232
  %v234 = vpop.f32.mrb[0].mxu0
  %235 = vmatprep.mubr.f32.mxu0 0.0
  %236 = vmatmul.mubr.f32.gmra.mrb[0].mxu0 %v161
  %v237 = vpop.f32.mrb[0].mxu0
  %v238 = vadd.f32 %v149, %v237
  %v239 = vpop.f32.mrb[0].mxu0
  %240 = vmatprep.mubr.f32.mxu0 0.0
  %241 = vmatmul.mubr.f32.gmra.mrb[0].mxu0 %v164
  %v242 = vpop.f32.mrb[0].mxu0
  %v243 = vadd.f32 %v154, %v242
  %v244 = vpop.f32.mrb[0].mxu0
  %245 = vdwg.mxu0
  %vm246 = vcmask 31744
  %247 = vst.msk [vmem:[%s5] sm:$0xff] %vm246, %v233
  %vm248 = vcmask 27648
  %249 = vst.msk [vmem:[%s5 + $0x8] sm:$0xf] %vm248, %v238
  %252 = vrot.lane.b32.xlu0 %v238, 124
  %v253 = vpop.permute.xlu0 %252
  %254 = vrot.lane.b32.xlu0 %v243, 124
  %v255 = vpop.permute.xlu0 %254
  %vm258 = vcmask 7172
  %259 = vst.msk [vmem:[%s6 - $0x4] sm:$0xf0] %vm258, %v253
  %vm260 = vcmask 5120
  %261 = vst.msk [vmem:[%s6 + $0x4] sm:$0x3f] %vm260, %v255
  %262 = vmatprep.subr.mxu0 0.0
  %263 = vmatpush1.msra.mxu0 %v127
  %264 = vmatprep.subr.mxu0 0.0
  %265 = vmatpush1.msra.mxu0 %v132
  %266 = vmatprep.subr.mxu0 0.0
  %267 = vmatpush1.msra.mxu0 0.0
  %268 = vmatprep.subr.mxu0 0.0
  %269 = vmatpush1.msra.mxu0 0.0
  %270 = vmatprep.subr.mxu0 0.0
  %271 = vmatpush1.msra.mxu0 0.0
  %272 = vmatprep.subr.mxu0 0.0
  %273 = vmatpush1.msra.mxu0 0.0
  %274 = vmatprep.subr.mxu0 0.0
  %275 = vmatpush1.msra.mxu0 0.0
  %276 = vmatprep.subr.mxu0 0.0
  %277 = vmatpush1.msra.mxu0 0.0
  %278 = vmatprep.subr.mxu0 0.0
  %279 = vmatpush1.msra.mxu0 0.0
  %280 = vmatprep.subr.mxu0 0.0
  %281 = vmatpush1.msra.mxu0 0.0
  %282 = vmatprep.subr.mxu0 0.0
  %283 = vmatpush1.msra.mxu0 0.0
  %284 = vmatprep.subr.mxu0 0.0
  %285 = vmatpush1.msra.mxu0 0.0
  %286 = vmatprep.subr.mxu0 0.0
  %287 = vmatpush1.msra.mxu0 0.0
  %288 = vmatprep.subr.mxu0 0.0
  %289 = vmatpush1.msra.mxu0 0.0
  %290 = vmatprep.subr.mxu0 0.0
  %291 = vmatpush1.msra.mxu0 0.0
  %292 = vmatprep.subr.mxu0 0.0
  %293 = vmatpush1.msra.mxu0 0.0
  %294 = vmatprep.subr.mxu0 0.0
  %295 = vmatpush1.msra.mxu0 0.0
  %296 = vmatprep.subr.mxu0 0.0
  %297 = vmatpush1.msra.mxu0 0.0
  %298 = vmatprep.subr.mxu0 0.0
  %299 = vmatpush1.msra.mxu0 0.0
  %300 = vmatprep.subr.mxu0 0.0
  %301 = vmatpush1.msra.mxu0 0.0
  %302 = vmatprep.subr.mxu0 0.0
  %303 = vmatpush1.msra.mxu0 0.0
  %304 = vmatprep.subr.mxu0 0.0
  %305 = vmatpush1.msra.mxu0 0.0
  %306 = vmatprep.subr.mxu0 0.0
  %307 = vmatpush1.msra.mxu0 0.0
  %308 = vmatprep.subr.mxu0 0.0
  %309 = vmatpush1.msra.mxu0 0.0
  %310 = vmatprep.subr.mxu0 0.0
  %311 = vmatpush1.msra.mxu0 0.0
  %312 = vmatprep.subr.mxu0 0.0
  %313 = vmatpush1.msra.mxu0 0.0
  %314 = vmatprep.subr.mxu0 0.0
  %315 = vmatpush1.msra.mxu0 0.0
  %316 = vmatprep.subr.mxu0 0.0
  %317 = vmatpush1.msra.mxu0 0.0
  %318 = vmatprep.subr.mxu0 0.0
  %319 = vmatpush1.msra.mxu0 0.0
  %320 = vmatprep.subr.mxu0 0.0
  %321 = vmatpush1.msra.mxu0 0.0
  %322 = vmatprep.subr.mxu0 0.0
  %323 = vmatpush1.msra.mxu0 0.0
  %324 = vmatprep.subr.mxu0 0.0
  %325 = vmatpush1.msra.mxu0 0.0
  %326 = vmatprep.mubr.f32.mxu0 0.0
  %327 = vmatmul.mubr.f32.gmra.mrb[0].mxu0 %v158
  %v328 = vpop.f32.mrb[0].mxu0
  %v329 = vadd.f32 %v144, %v328
  %v330 = vpop.f32.mrb[0].mxu0
  %331 = vmatprep.mubr.f32.mxu0 0.0
  %332 = vmatmul.mubr.f32.gmra.mrb[0].mxu0 %v161
  %v333 = vpop.f32.mrb[0].mxu0
  %v334 = vadd.f32 %v149, %v333
  %v335 = vpop.f32.mrb[0].mxu0
  %336 = vmatprep.mubr.f32.mxu0 0.0
  %337 = vmatmul.mubr.f32.gmra.mrb[0].mxu0 %v164
  %v338 = vpop.f32.mrb[0].mxu0
  %v339 = vadd.f32 %v154, %v338
  %v340 = vpop.f32.mrb[0].mxu0
  %341 = vdwg.mxu0
  %s342 = scalar_lea.vmem %s5, 16
  %343 = vst.msk [vmem:[%s342] sm:$0xff] %vm246, %v329
  %344 = vst.msk [vmem:[%s342 + $0x8] sm:$0xf] %vm248, %v334
  %347 = vrot.lane.b32.xlu0 %v334, 124
  %v348 = vpop.permute.xlu0 %347
  %349 = vrot.lane.b32.xlu0 %v339, 124
  %v350 = vpop.permute.xlu0 %349
  %s353 = scalar_lea.vmem %s6, 16
  %354 = vst.msk [vmem:[%s353 - $0x4] sm:$0xf0] %vm258, %v348
  %355 = vst.msk [vmem:[%s353 + $0x4] sm:$0x3f] %vm260, %v350
  // Predicated region
  $region22: #{tpu_custom_call.1} parent=0 // pred_check
    _
  $region23: #{tpu_custom_call.1} parent=0 // pred_check_branch
    %357 = sbr.rel (0) target = $region25
  $region24: #{tpu_custom_call.1} parent=0 // pred_region
    _
  $region25: #{tpu_custom_call.1} parent=0 // pred_fallthru
    _
  // Predicated region
  $region26: #{tpu_custom_call.1} parent=0 // pred_check
    _
  $region27: #{tpu_custom_call.1} parent=0 // pred_check_branch
    %359 = sbr.rel (0) target = $region29
  $region28: #{tpu_custom_call.1} parent=0 // pred_region
    _
  $region29: #{tpu_custom_call.1} parent=0 // pred_fallthru
    _
  // Predicated region
  $region30: #{tpu_custom_call.1} parent=0 // pred_check
    _
  $region31: #{tpu_custom_call.1} parent=0 // pred_check_branch
    %361 = sbr.rel (0) target = $region33
  $region32: #{tpu_custom_call.1} parent=0 // pred_region
    _
  $region33: #{tpu_custom_call.1} parent=0 // pred_fallthru
    _
  // Predicated region
  $region34: #{tpu_custom_call.1} parent=0 // pred_check
    _
  $region35: #{tpu_custom_call.1} parent=0 // pred_check_branch
    %363 = sbr.rel (0) target = $region37
  $region36: #{tpu_custom_call.1} parent=0 // pred_region
    _
  $region37: #{tpu_custom_call.1} parent=0 // pred_fallthru
    _

</llo_original>
